<compile_context>
chip_gen: v5e
topology: v5e:2x2
jax: 0.10.0
libtpu: 0.0.40
codegen_flags: <defaults>
</compile_context>

<pallas_src>
import functools

import jax
import jax.numpy as jnp
from jax.experimental import pallas as pl
from jax.experimental.pallas import tpu as pltpu


def _round_up(x, m):
    return (x + m - 1) // m * m


def dld3_kernel(patches_ref, w_conv_ref, b_conv_ref,
                w_fc_ref, b_fc_ref, w_reg_ref, b_reg_ref,
                cls_ref, reg_ref, feats_acc, *, hw, tile_rows):
    r = pl.program_id(1)

    @pl.when(r == 0)
    def _():
        feats_acc[...] = jnp.zeros_like(feats_acc)

    # --- backbone stem: conv as im2col matmul (bf16 MXU, f32 acc) + bias + ReLU ---
    conv = jnp.dot(patches_ref[0], w_conv_ref[...],
                   preferred_element_type=jnp.float32)            # (tile_rows, F_p)
    conv = jnp.maximum(conv + b_conv_ref[...], 0.0)

    # --- streaming global-average-pool partial sum: ones-row @ conv on the MXU ---
    ones_row = jnp.ones((1, tile_rows), jnp.float32)
    feats_acc[...] += jnp.dot(ones_row, conv,
                              preferred_element_type=jnp.float32)  # (1, F_p)

    # --- finalize on the last row tile: GAP mean -> fc -> regressor ---
    @pl.when(r == pl.num_programs(1) - 1)
    def _():
        feats = feats_acc[...] * (1.0 / hw)                        # (1, F_p)
        cls = jnp.dot(feats, w_fc_ref[...],
                      preferred_element_type=jnp.float32) + b_fc_ref[...]
        cls_ref[0] = cls
        reg_ref[0] = jnp.dot(cls, w_reg_ref[...],
                             preferred_element_type=jnp.float32) + b_reg_ref[...]


def im2col_3x3_same(x_nhwc):
    """(B,H,W,C) -> (B, H*W, 9*C) patches, ordering (kh, kw, c)."""
    # TODO(synk): on v5e (HBM-BW bound) replace this wrapper im2col (9x HBM blowup)
    # with an in-kernel halo'd 3x3 accumulation via manual DMA of NHWC tiles.
    B, H, W, C = x_nhwc.shape
    xp = jnp.pad(x_nhwc, ((0, 0), (1, 1), (1, 1), (0, 0)))
    cols = [xp[:, dh:dh + H, dw:dw + W, :] for dh in range(3) for dw in range(3)]
    patches = jnp.concatenate(cols, axis=-1)                       # (B,H,W,9C)
    return patches.reshape(B, H * W, 9 * C)


def dld3_forward(x_nchw, params, *, tile_rows=None):
    """Returns (class_scores, regression_score), like DLD3Model.forward."""
    w_conv, b_conv, w_fc, b_fc, w_reg, b_reg = params
    B, C, H, W = x_nchw.shape
    HW = H * W
    KKC = 9 * C
    F = w_conv.shape[1]
    n_cls = w_fc.shape[1]
    n_reg = w_reg.shape[1]

    # lane-dense padding of every matmul K/N dim
    KKC_p = _round_up(KKC, 128)
    F_p = _round_up(F, 128)
    NCLS_p = _round_up(n_cls, 128)
    NREG_p = _round_up(n_reg, 128)

    if tile_rows is None:
        tile_rows = next(t for t in (1024, 512, 256, 128, 64, 32, 16, 8, HW)
                         if HW % t == 0)
    assert HW % tile_rows == 0, "tile_rows must divide H*W"
    num_r = HW // tile_rows

    # glue: NCHW -> NHWC, im2col, pad, cast the hot matmul operands to bf16
    x_nhwc = jnp.transpose(x_nchw, (0, 2, 3, 1))
    patches = im2col_3x3_same(x_nhwc)                              # (B, HW, 9C) f32
    patches = jnp.pad(patches,
                      ((0, 0), (0, 0), (0, KKC_p - KKC))).astype(jnp.bfloat16)

    w_conv_p = jnp.pad(w_conv, ((0, KKC_p - KKC), (0, F_p - F))).astype(jnp.bfloat16)
    b_conv_p = jnp.pad(b_conv, ((0, 0), (0, F_p - F)))
    w_fc_p = jnp.pad(w_fc, ((0, F_p - F), (0, NCLS_p - n_cls)))
    b_fc_p = jnp.pad(b_fc, ((0, 0), (0, NCLS_p - n_cls)))
    w_reg_p = jnp.pad(w_reg, ((0, NCLS_p - n_cls), (0, NREG_p - n_reg)))
    b_reg_p = jnp.pad(b_reg, ((0, 0), (0, NREG_p - n_reg)))

    kernel = functools.partial(dld3_kernel, hw=HW, tile_rows=tile_rows)

    flops = (2 * B * HW * KKC_p * F_p          # conv matmul
             + 2 * B * HW * F_p                # GAP ones-matmul
             + 2 * B * F_p * NCLS_p            # fc
             + 2 * B * NCLS_p * NREG_p)        # regressor
    bytes_accessed = (patches.size * 2 + w_conv_p.size * 2
                      + 4 * (b_conv_p.size + w_fc_p.size + b_fc_p.size
                             + w_reg_p.size + b_reg_p.size)
                      + 4 * B * (NCLS_p + NREG_p))

    cls_p, reg_p = pl.pallas_call(
        kernel,
        out_shape=(jax.ShapeDtypeStruct((B, 1, NCLS_p), jnp.float32),
                   jax.ShapeDtypeStruct((B, 1, NREG_p), jnp.float32)),
        grid_spec=pltpu.PrefetchScalarGridSpec(
            num_scalar_prefetch=0,
            grid=(B, num_r),
            in_specs=[
                pl.BlockSpec((1, tile_rows, KKC_p), lambda b, r: (b, r, 0)),
                pl.BlockSpec((KKC_p, F_p), lambda b, r: (0, 0)),
                pl.BlockSpec((1, F_p), lambda b, r: (0, 0)),
                pl.BlockSpec((F_p, NCLS_p), lambda b, r: (0, 0)),
                pl.BlockSpec((1, NCLS_p), lambda b, r: (0, 0)),
                pl.BlockSpec((NCLS_p, NREG_p), lambda b, r: (0, 0)),
                pl.BlockSpec((1, NREG_p), lambda b, r: (0, 0)),
            ],
            out_specs=(pl.BlockSpec((1, 1, NCLS_p), lambda b, r: (b, 0, 0)),
                       pl.BlockSpec((1, 1, NREG_p), lambda b, r: (b, 0, 0))),
            scratch_shapes=[pltpu.VMEM((1, F_p), jnp.float32)]),
        compiler_params=pltpu.CompilerParams(
            dimension_semantics=("parallel", "arbitrary"),
            vmem_limit_bytes=32 * 1024 * 1024),
        cost_estimate=pl.CostEstimate(flops=flops, transcendentals=0,
                                      bytes_accessed=bytes_accessed),
    )(patches, w_conv_p, b_conv_p, w_fc_p, b_fc_p, w_reg_p, b_reg_p)

    # slice the lane-dense padded outputs back to module shapes
    return cls_p[:, 0, :n_cls], reg_p[:, 0, :n_reg]


def reference_forward(x_nchw, params):
    """Pure-JAX f32 reference with the exact module semantics."""
    w_conv, b_conv, w_fc, b_fc, w_reg, b_reg = params
    x_nhwc = jnp.transpose(x_nchw, (0, 2, 3, 1))
    patches = im2col_3x3_same(x_nhwc)                              # (B, HW, 9C)
    conv = jnp.maximum(patches @ w_conv + b_conv, 0.0)
    feats = conv.mean(axis=1)
    cls = feats @ w_fc + b_fc
    reg = cls @ w_reg + b_reg
    return cls, reg


def init_params(key, in_ch, num_fltrs, n_class_distribution, n_regression):
    ks = jax.random.split(key, 6)
    w_conv = 0.05 * jax.random.normal(ks[0], (9 * in_ch, num_fltrs), jnp.float32)
    b_conv = 0.01 * jax.random.normal(ks[1], (1, num_fltrs), jnp.float32)
    w_fc = 0.05 * jax.random.normal(ks[2], (num_fltrs, n_class_distribution), jnp.float32)
    b_fc = 0.01 * jax.random.normal(ks[3], (1, n_class_distribution), jnp.float32)
    w_reg = 0.05 * jax.random.normal(ks[4], (n_class_distribution, n_regression), jnp.float32)
    b_reg = 0.01 * jax.random.normal(ks[5], (1, n_regression), jnp.float32)
    return (w_conv, b_conv, w_fc, b_fc, w_reg, b_reg)


if __name__ == "__main__":
    # small shapes: batch=2, channels=4, spatial=16x16; num_fltrs stand-in=32
    B, C, H, W = 2, 4, 16, 16
    NUM_FLTRS = 32               # stands in for resnest50 fc.in_features (2048)
    N_CLASS_DISTRIBUTION = 10
    N_REGRESSION = 3

    key = jax.random.PRNGKey(0)
    k_x, k_p = jax.random.split(key)
    x = jax.random.normal(k_x, (B, C, H, W), jnp.float32)
    params = init_params(k_p, C, NUM_FLTRS, N_CLASS_DISTRIBUTION, N_REGRESSION)

    # tile_rows=128 so the test exercises the multi-step GAP accumulation (R=2)
    fwd = jax.jit(functools.partial(dld3_forward, tile_rows=128))
    cls, reg = fwd(x, params)
    jax.block_until_ready((cls, reg))

    cls_ref, reg_ref = reference_forward(x, params)
    assert cls.shape == (B, N_CLASS_DISTRIBUTION) and reg.shape == (B, N_REGRESSION)
    # bf16 conv-matmul operands (f32 accumulation) -> loosen tolerance vs f32 ref
    assert jnp.allclose(cls, cls_ref, atol=1e-2, rtol=1e-2)
    assert jnp.allclose(reg, reg_ref, atol=1e-2, rtol=1e-2)

    print("KERNEL_OK")
</pallas_src>

<mosaic_0001>
module attributes {stable_mosaic.version = 11 : i64} {
  func.func @dld3_kernel(%arg0: i32, %arg1: i32, %arg2: memref<1x128x128xbf16, #tpu.memory_space<vmem>>, %arg3: memref<128x128xbf16, #tpu.memory_space<vmem>>, %arg4: memref<1x128xf32, #tpu.memory_space<vmem>>, %arg5: memref<128x128xf32, #tpu.memory_space<vmem>>, %arg6: memref<1x128xf32, #tpu.memory_space<vmem>>, %arg7: memref<128x128xf32, #tpu.memory_space<vmem>>, %arg8: memref<1x128xf32, #tpu.memory_space<vmem>>, %arg9: memref<1x1x128xf32, #tpu.memory_space<vmem>>, %arg10: memref<1x1x128xf32, #tpu.memory_space<vmem>>, %arg11: memref<1x128xf32, #tpu.memory_space<vmem>>) attributes {dimension_semantics = [#tpu.dimension_semantics<parallel>, #tpu.dimension_semantics<arbitrary>], iteration_bounds = array<i64: 2, 2>, scalar_prefetch = 0 : i64, scratch_operands = 1 : i64, tpu.core_type = #tpu.core_type<tc>, window_params = [{transform_indices = @transform_0, window_bounds = array<i64: 1, 128, 128>}, {pipeline_mode = #tpu.pipeline_mode<synchronous>, transform_indices = @transform_1, window_bounds = array<i64: 128, 128>}, {pipeline_mode = #tpu.pipeline_mode<synchronous>, transform_indices = @transform_2, window_bounds = array<i64: 1, 128>}, {pipeline_mode = #tpu.pipeline_mode<synchronous>, transform_indices = @transform_3, window_bounds = array<i64: 128, 128>}, {pipeline_mode = #tpu.pipeline_mode<synchronous>, transform_indices = @transform_4, window_bounds = array<i64: 1, 128>}, {pipeline_mode = #tpu.pipeline_mode<synchronous>, transform_indices = @transform_5, window_bounds = array<i64: 128, 128>}, {pipeline_mode = #tpu.pipeline_mode<synchronous>, transform_indices = @transform_6, window_bounds = array<i64: 1, 128>}, {transform_indices = @transform_7, window_bounds = array<i64: 1, 1, 128>}, {transform_indices = @transform_8, window_bounds = array<i64: 1, 1, 128>}]} {
    %c0_i32 = arith.constant 0 : i32
    %0 = arith.cmpi eq, %arg1, %c0_i32 : i32
    %1 = arith.extui %0 : i1 to i32
    %c0_i32_0 = arith.constant 0 : i32
    %2 = arith.cmpi ne, %1, %c0_i32_0 : i32
    scf.if %2 {
      %cst_15 = arith.constant 0.000000e+00 : f32
      %20 = vector.broadcast %cst_15 : f32 to vector<1x128xf32>
      %c0_16 = arith.constant 0 : index
      %c0_17 = arith.constant 0 : index
      %21 = vector.load %arg11[%c0_16, %c0_17] : memref<1x128xf32, #tpu.memory_space<vmem>>, vector<1x128xf32>
      tpu.vector_store %arg11[%c0_16, %c0_17], %20 {strides = array<i32>} : memref<1x128xf32, #tpu.memory_space<vmem>>, vector<1x128xf32>,
    } else {
    }
    %c0 = arith.constant 0 : index
    %c0_1 = arith.constant 0 : index
    %c0_2 = arith.constant 0 : index
    %3 = vector.load %arg2[%c0, %c0_1, %c0_2] : memref<1x128x128xbf16, #tpu.memory_space<vmem>>, vector<1x128x128xbf16>
    %4 = vector.shape_cast %3 : vector<1x128x128xbf16> to vector<128x128xbf16>
    %c0_3 = arith.constant 0 : index
    %c0_4 = arith.constant 0 : index
    %5 = vector.load %arg3[%c0_3, %c0_4] : memref<128x128xbf16, #tpu.memory_space<vmem>>, vector<128x128xbf16>
    %cst = arith.constant dense<0.000000e+00> : vector<128x128xf32>
    %6 = tpu.matmul %4, %5, %cst {dimension_numbers = #tpu.dot_dimension_numbers<[1], [0], [0], [1], [0, 0, 1, 1], [], []>} : vector<128x128xbf16>, vector<128x128xbf16>, vector<128x128xf32> -> vector<128x128xf32>
    %c0_5 = arith.constant 0 : index
    %c0_6 = arith.constant 0 : index
    %7 = vector.load %arg4[%c0_5, %c0_6] : memref<1x128xf32, #tpu.memory_space<vmem>>, vector<1x128xf32>
    %8 = vector.broadcast %7 : vector<1x128xf32> to vector<128x128xf32>
    %9 = arith.addf %6, %8 : vector<128x128xf32>
    %cst_7 = arith.constant 0.000000e+00 : f32
    %10 = vector.broadcast %cst_7 : f32 to vector<128x128xf32>
    %11 = arith.maximumf %9, %10 : vector<128x128xf32>
    %cst_8 = arith.constant 1.000000e+00 : f32
    %12 = vector.broadcast %cst_8 : f32 to vector<1x128xf32>
    %c0_9 = arith.constant 0 : index
    %c0_10 = arith.constant 0 : index
    %13 = vector.load %arg11[%c0_9, %c0_10] : memref<1x128xf32, #tpu.memory_space<vmem>>, vector<1x128xf32>
    %cst_11 = arith.constant dense<0.000000e+00> : vector<1x128xf32>
    %14 = tpu.matmul %12, %11, %cst_11 {dimension_numbers = #tpu.dot_dimension_numbers<[1], [0], [0], [1], [0, 0, 1, 1], [], []>} : vector<1x128xf32>, vector<128x128xf32>, vector<1x128xf32> -> vector<1x128xf32>
    %15 = arith.addf %13, %14 : vector<1x128xf32>
    %c0_12 = arith.constant 0 : index
    %c0_13 = arith.constant 0 : index
    %16 = vector.load %arg11[%c0_12, %c0_13] : memref<1x128xf32, #tpu.memory_space<vmem>>, vector<1x128xf32>
    tpu.vector_store %arg11[%c0_12, %c0_13], %15 {strides = array<i32>} : memref<1x128xf32, #tpu.memory_space<vmem>>, vector<1x128xf32>,
    %c1_i32 = arith.constant 1 : i32
    %17 = arith.cmpi eq, %arg1, %c1_i32 : i32
    %18 = arith.extui %17 : i1 to i32
    %c0_i32_14 = arith.constant 0 : i32
    %19 = arith.cmpi ne, %18, %c0_i32_14 : i32
    scf.if %19 {
      %c0_15 = arith.constant 0 : index
      %c0_16 = arith.constant 0 : index
      %20 = vector.load %arg11[%c0_15, %c0_16] : memref<1x128xf32, #tpu.memory_space<vmem>>, vector<1x128xf32>
      %cst_17 = arith.constant 3.906250e-03 : f32
      %21 = vector.broadcast %cst_17 : f32 to vector<1x128xf32>
      %22 = arith.mulf %20, %21 : vector<1x128xf32>
      %c0_18 = arith.constant 0 : index
      %c0_19 = arith.constant 0 : index
      %23 = vector.load %arg5[%c0_18, %c0_19] : memref<128x128xf32, #tpu.memory_space<vmem>>, vector<128x128xf32>
      %cst_20 = arith.constant dense<0.000000e+00> : vector<1x128xf32>
      %24 = tpu.matmul %22, %23, %cst_20 {dimension_numbers = #tpu.dot_dimension_numbers<[1], [0], [0], [1], [0, 0, 1, 1], [], []>} : vector<1x128xf32>, vector<128x128xf32>, vector<1x128xf32> -> vector<1x128xf32>
      %c0_21 = arith.constant 0 : index
      %c0_22 = arith.constant 0 : index
      %25 = vector.load %arg6[%c0_21, %c0_22] : memref<1x128xf32, #tpu.memory_space<vmem>>, vector<1x128xf32>
      %26 = arith.addf %24, %25 : vector<1x128xf32>
      %c0_23 = arith.constant 0 : index
      %c0_24 = arith.constant 0 : index
      %c0_25 = arith.constant 0 : index
      %27 = vector.load %arg9[%c0_23, %c0_24, %c0_25] : memref<1x1x128xf32, #tpu.memory_space<vmem>>, vector<1x1x128xf32>
      %28 = vector.shape_cast %27 : vector<1x1x128xf32> to vector<1x128xf32>
      %29 = vector.shape_cast %26 : vector<1x128xf32> to vector<1x1x128xf32>
      tpu.vector_store %arg9[%c0_23, %c0_24, %c0_25], %29 {strides = array<i32>} : memref<1x1x128xf32, #tpu.memory_space<vmem>>, vector<1x1x128xf32>,
      %c0_26 = arith.constant 0 : index
      %c0_27 = arith.constant 0 : index
      %30 = vector.load %arg7[%c0_26, %c0_27] : memref<128x128xf32, #tpu.memory_space<vmem>>, vector<128x128xf32>
      %cst_28 = arith.constant dense<0.000000e+00> : vector<1x128xf32>
      %31 = tpu.matmul %26, %30, %cst_28 {dimension_numbers = #tpu.dot_dimension_numbers<[1], [0], [0], [1], [0, 0, 1, 1], [], []>} : vector<1x128xf32>, vector<128x128xf32>, vector<1x128xf32> -> vector<1x128xf32>
      %c0_29 = arith.constant 0 : index
      %c0_30 = arith.constant 0 : index
      %32 = vector.load %arg8[%c0_29, %c0_30] : memref<1x128xf32, #tpu.memory_space<vmem>>, vector<1x128xf32>
      %33 = arith.addf %31, %32 : vector<1x128xf32>
      %c0_31 = arith.constant 0 : index
      %c0_32 = arith.constant 0 : index
      %c0_33 = arith.constant 0 : index
      %34 = vector.load %arg10[%c0_31, %c0_32, %c0_33] : memref<1x1x128xf32, #tpu.memory_space<vmem>>, vector<1x1x128xf32>
      %35 = vector.shape_cast %34 : vector<1x1x128xf32> to vector<1x128xf32>
      %36 = vector.shape_cast %33 : vector<1x128xf32> to vector<1x1x128xf32>
      tpu.vector_store %arg10[%c0_31, %c0_32, %c0_33], %36 {strides = array<i32>} : memref<1x1x128xf32, #tpu.memory_space<vmem>>, vector<1x1x128xf32>,
    } else {
    }
    return
  }
  func.func @transform_0(%arg0: i32, %arg1: i32) -> (i32, i32, i32) {
    %c0_i32 = arith.constant 0 : i32
    %c0_i32_0 = arith.constant 0 : i32
    return %arg0, %arg1, %c0_i32 : i32, i32, i32
  }
  func.func @transform_1(%arg0: i32, %arg1: i32) -> (i32, i32) {
    %c0_i32 = arith.constant 0 : i32
    %c0_i32_0 = arith.constant 0 : i32
    %c0_i32_1 = arith.constant 0 : i32
    return %c0_i32, %c0_i32_0 : i32, i32
  }
  func.func @transform_2(%arg0: i32, %arg1: i32) -> (i32, i32) {
    %c0_i32 = arith.constant 0 : i32
    %c0_i32_0 = arith.constant 0 : i32
    %c0_i32_1 = arith.constant 0 : i32
    return %c0_i32, %c0_i32_0 : i32, i32
  }
  func.func @transform_3(%arg0: i32, %arg1: i32) -> (i32, i32) {
    %c0_i32 = arith.constant 0 : i32
    %c0_i32_0 = arith.constant 0 : i32
    %c0_i32_1 = arith.constant 0 : i32
    return %c0_i32, %c0_i32_0 : i32, i32
  }
  func.func @transform_4(%arg0: i32, %arg1: i32) -> (i32, i32) {
    %c0_i32 = arith.constant 0 : i32
    %c0_i32_0 = arith.constant 0 : i32
    %c0_i32_1 = arith.constant 0 : i32
    return %c0_i32, %c0_i32_0 : i32, i32
  }
  func.func @transform_5(%arg0: i32, %arg1: i32) -> (i32, i32) {
    %c0_i32 = arith.constant 0 : i32
    %c0_i32_0 = arith.constant 0 : i32
    %c0_i32_1 = arith.constant 0 : i32
    return %c0_i32, %c0_i32_0 : i32, i32
  }
  func.func @transform_6(%arg0: i32, %arg1: i32) -> (i32, i32) {
    %c0_i32 = arith.constant 0 : i32
    %c0_i32_0 = arith.constant 0 : i32
    %c0_i32_1 = arith.constant 0 : i32
    return %c0_i32, %c0_i32_0 : i32, i32
  }
  func.func @transform_7(%arg0: i32, %arg1: i32) -> (i32, i32, i32) {
    %c0_i32 = arith.constant 0 : i32
    %c0_i32_0 = arith.constant 0 : i32
    %c0_i32_1 = arith.constant 0 : i32
    return %arg0, %c0_i32, %c0_i32_0 : i32, i32, i32
  }
  func.func @transform_8(%arg0: i32, %arg1: i32) -> (i32, i32, i32) {
    %c0_i32 = arith.constant 0 : i32
    %c0_i32_0 = arith.constant 0 : i32
    %c0_i32_1 = arith.constant 0 : i32
    return %arg0, %c0_i32, %c0_i32_0 : i32, i32, i32
  }
}

</mosaic_0001>

<llo_original>
// kernel: dld3_forward.1
$region0: #{dld3_forward.1}
  #allocation0 [shape = 'u32[]', space=smem, size = 0x4, offset = 0x4, fixed_abs, tag = 'smem constant byte address 0x4 - core index']
  #allocation1 [shape = 'u32[72,128]{1,0:T(1,128)}', space=vmem, size = 0x9000, scoped, tag = 'internal scratch']
  #allocation2 [shape = 'f32[1,128]{1,0:T(1,128)}', space=vmem, size = 0x200, scoped, tag = 'scratch operand']
  %s0 = inlined_call_operand.vmem [shape: bf16[2,256,128], index: 0, kind: input, shape index: {}]
  %s1 = inlined_call_operand.vmem [shape: bf16[128,128], index: 1, kind: input, shape index: {}]
  %s2 = inlined_call_operand.vmem [shape: f32[1,128], index: 2, kind: input, shape index: {}]
  %s3 = inlined_call_operand.vmem [shape: f32[128,128], index: 3, kind: input, shape index: {}]
  %s4 = inlined_call_operand.vmem [shape: f32[1,128], index: 4, kind: input, shape index: {}]
  %s5 = inlined_call_operand.vmem [shape: f32[128,128], index: 5, kind: input, shape index: {}]
  %s6 = inlined_call_operand.vmem [shape: f32[1,128], index: 6, kind: input, shape index: {}]
  %s7 = inlined_call_operand.hbm [shape: f32[2,1,128], index: 7, kind: output, shape index: {0}]
  %s8 = inlined_call_operand.hbm [shape: f32[2,1,128], index: 8, kind: output, shape index: {1}]
  %9 = xla_tuple %s7, %s8
  %s10 = sld [smem:[#allocation0]]
  $region77: #{dld3_forward.1} parent=0
    _
  %s12 = ssub.s32 1, %s10
  %s13 = scalar_select 0, %s12, %s10
  $region1: #{dld3_forward.1} parent=0
    #allocation3 [shape = 'u8[1024]{0}', space=vmem, size = 0x400, scoped, tag = 'output window, operand 0']
    #allocation4 [shape = 's32[2]{0}', space=sflag, size = 0x8, scoped, tag = 'scoped memory for dld3_forward.1']
    #allocation5 [shape = 'u8[1024]{0}', space=vmem, size = 0x400, scoped, tag = 'output window, operand 1']
    #allocation6 [shape = 's32[2]{0}', space=sflag, size = 0x8, scoped, tag = 'scoped memory for dld3_forward.1']
    %14 = vsyncpa [#allocation4], 0
    %s15 = scalar_lea.sflag [#allocation4], 1
    %16 = vsyncpa %s15, 0
    %17 = vsyncpa [#allocation6], 0
    %s18 = scalar_lea.sflag [#allocation6], 1
    %19 = vsyncpa %s18, 0
    loop: start=0, step=1, limit=6
    $region2: #{dld3_forward.1} parent=1 // loop_pre_header
      _
    $region3: #{dld3_forward.1} parent=1 // loop_header
      %s21 = sphi 0, %s25
      %p22 = scmp.ge.s32.totalorder %s21, 6
      %s28 = sphi 0, %s40
      %s29 = sphi 0, %s36
      %s30 = sphi 0, %s28
      %s31 = sphi 0, %s29
      %s32 = sphi 0, %s30
      %s33 = sphi 0, %s31
      %s45 = sphi 0, %s47
      %s48 = sphi 0, %s45
      %s49 = sphi 0, %s48
      %s65 = sphi 0, %s49
      %s69 = sphi 0, %s69
      %s71 = sphi 0, %s69
      %s72 = sphi 0, %s71
      %s86 = sphi 0, %s72
      %s90 = sphi 0, %s90
      %s92 = sphi 0, %s90
      %s93 = sphi 0, %s92
      %s107 = sphi 0, %s93
      %s111 = sphi 0, %s111
      %s113 = sphi 0, %s111
      %s114 = sphi 0, %s113
      %s128 = sphi 0, %s114
      %s132 = sphi 0, %s132
      %s134 = sphi 0, %s132
      %s135 = sphi 0, %s134
      %s149 = sphi 0, %s135
      %s153 = sphi 0, %s153
      %s155 = sphi 0, %s153
      %s156 = sphi 0, %s155
      %s170 = sphi 0, %s156
      %s174 = sphi 0, %s174
      %s176 = sphi 0, %s174
      %s177 = sphi 0, %s176
      %s191 = sphi 0, %s177
      %s197 = sphi 0, %s199
      %s200 = sphi 0, %s197
      %s201 = sphi 0, %s200
      %s217 = sphi 0, %s201
      %s223 = sphi 0, %s225
      %s226 = sphi 0, %s223
      %s227 = sphi 0, %s226
      %s243 = sphi 0, %s227
    $region4: #{dld3_forward.1} parent=1 // loop_header_branch
      %24 = sbr.rel (%p22) target = $region8
    $region5: #{dld3_forward.1} parent=1 // loop_body
      %s26 = ssub.s32 %s21, 1
      %s27 = ssub.s32 %s21, 2
      %s34 = sadd.s32 1, %s29
      %p35 = scmp.ge.s32.totalorder %s34, 2
      %s36 = scalar_select %p35, 0, %s34
      %s37 = sadd.s32 1, %s28
      %s38 = scalar_select %p35, %s37, %s28
      %p39 = scmp.ge.s32.totalorder %s38, 2
      %s40 = scalar_select %p39, 0, %s38
      %s41 = ssub.s32 %s28, %s40
      %s42 = ssub.s32 %s29, %s36
      %s43 = sor.u32 %s41, %s42
      %p44 = scmp.eq.s32.totalorder %s43, 0
      %s46 = sadd.s32 %s45, 1
      %s47 = scalar_select %p44, %s45, %s46
      %p50 = pneg %p44
      %p51 = scmp.eq.s32.totalorder %s21, 3
      %p52 = por %p50, %p51
      %p53 = scmp.ne.s32.totalorder %s45, %s48
      %p54 = scmp.eq.s32.totalorder %s21, 0
      %p55 = por %p53, %p54
      %p56 = scmp.ne.s32.totalorder %s45, %s48
      %p57 = scmp.eq.s32.totalorder %s26, 3
      %p58 = por %p56, %p57
      %p59 = scmp.ne.s32.totalorder %s48, %s49
      %p60 = scmp.eq.s32.totalorder %s26, 0
      %p61 = por %p59, %p60
      %p62 = scmp.ne.s32.totalorder %s48, %s49
      %p63 = scmp.eq.s32.totalorder %s27, 3
      %p64 = por %p62, %p63
      %p66 = scmp.ne.s32.totalorder %s49, %s65
      %p67 = scmp.eq.s32.totalorder %s27, 0
      %p68 = por %p66, %p67
      %s70 = sadd.s32 %s69, 1
      %p73 = scmp.eq.s32.totalorder %s21, 3
      %p74 = scmp.ne.s32.totalorder %s69, %s71
      %p75 = scmp.eq.s32.totalorder %s21, 0
      %p76 = por %p74, %p75
      %p77 = scmp.ne.s32.totalorder %s69, %s71
      %p78 = scmp.eq.s32.totalorder %s26, 3
      %p79 = por %p77, %p78
      %p80 = scmp.ne.s32.totalorder %s71, %s72
      %p81 = scmp.eq.s32.totalorder %s26, 0
      %p82 = por %p80, %p81
      %p83 = scmp.ne.s32.totalorder %s71, %s72
      %p84 = scmp.eq.s32.totalorder %s27, 3
      %p85 = por %p83, %p84
      %p87 = scmp.ne.s32.totalorder %s72, %s86
      %p88 = scmp.eq.s32.totalorder %s27, 0
      %p89 = por %p87, %p88
      %s91 = sadd.s32 %s90, 1
      %p94 = scmp.eq.s32.totalorder %s21, 3
      %p95 = scmp.ne.s32.totalorder %s90, %s92
      %p96 = scmp.eq.s32.totalorder %s21, 0
      %p97 = por %p95, %p96
      %p98 = scmp.ne.s32.totalorder %s90, %s92
      %p99 = scmp.eq.s32.totalorder %s26, 3
      %p100 = por %p98, %p99
      %p101 = scmp.ne.s32.totalorder %s92, %s93
      %p102 = scmp.eq.s32.totalorder %s26, 0
      %p103 = por %p101, %p102
      %p104 = scmp.ne.s32.totalorder %s92, %s93
      %p105 = scmp.eq.s32.totalorder %s27, 3
      %p106 = por %p104, %p105
      %p108 = scmp.ne.s32.totalorder %s93, %s107
      %p109 = scmp.eq.s32.totalorder %s27, 0
      %p110 = por %p108, %p109
      %s112 = sadd.s32 %s111, 1
      %p115 = scmp.eq.s32.totalorder %s21, 3
      %p116 = scmp.ne.s32.totalorder %s111, %s113
      %p117 = scmp.eq.s32.totalorder %s21, 0
      %p118 = por %p116, %p117
      %p119 = scmp.ne.s32.totalorder %s111, %s113
      %p120 = scmp.eq.s32.totalorder %s26, 3
      %p121 = por %p119, %p120
      %p122 = scmp.ne.s32.totalorder %s113, %s114
      %p123 = scmp.eq.s32.totalorder %s26, 0
      %p124 = por %p122, %p123
      %p125 = scmp.ne.s32.totalorder %s113, %s114
      %p126 = scmp.eq.s32.totalorder %s27, 3
      %p127 = por %p125, %p126
      %p129 = scmp.ne.s32.totalorder %s114, %s128
      %p130 = scmp.eq.s32.totalorder %s27, 0
      %p131 = por %p129, %p130
      %s133 = sadd.s32 %s132, 1
      %p136 = scmp.eq.s32.totalorder %s21, 3
      %p137 = scmp.ne.s32.totalorder %s132, %s134
      %p138 = scmp.eq.s32.totalorder %s21, 0
      %p139 = por %p137, %p138
      %p140 = scmp.ne.s32.totalorder %s132, %s134
      %p141 = scmp.eq.s32.totalorder %s26, 3
      %p142 = por %p140, %p141
      %p143 = scmp.ne.s32.totalorder %s134, %s135
      %p144 = scmp.eq.s32.totalorder %s26, 0
      %p145 = por %p143, %p144
      %p146 = scmp.ne.s32.totalorder %s134, %s135
      %p147 = scmp.eq.s32.totalorder %s27, 3
      %p148 = por %p146, %p147
      %p150 = scmp.ne.s32.totalorder %s135, %s149
      %p151 = scmp.eq.s32.totalorder %s27, 0
      %p152 = por %p150, %p151
      %s154 = sadd.s32 %s153, 1
      %p157 = scmp.eq.s32.totalorder %s21, 3
      %p158 = scmp.ne.s32.totalorder %s153, %s155
      %p159 = scmp.eq.s32.totalorder %s21, 0
      %p160 = por %p158, %p159
      %p161 = scmp.ne.s32.totalorder %s153, %s155
      %p162 = scmp.eq.s32.totalorder %s26, 3
      %p163 = por %p161, %p162
      %p164 = scmp.ne.s32.totalorder %s155, %s156
      %p165 = scmp.eq.s32.totalorder %s26, 0
      %p166 = por %p164, %p165
      %p167 = scmp.ne.s32.totalorder %s155, %s156
      %p168 = scmp.eq.s32.totalorder %s27, 3
      %p169 = por %p167, %p168
      %p171 = scmp.ne.s32.totalorder %s156, %s170
      %p172 = scmp.eq.s32.totalorder %s27, 0
      %p173 = por %p171, %p172
      %s175 = sadd.s32 %s174, 1
      %p178 = scmp.eq.s32.totalorder %s21, 3
      %p179 = scmp.ne.s32.totalorder %s174, %s176
      %p180 = scmp.eq.s32.totalorder %s21, 0
      %p181 = por %p179, %p180
      %p182 = scmp.ne.s32.totalorder %s174, %s176
      %p183 = scmp.eq.s32.totalorder %s26, 3
      %p184 = por %p182, %p183
      %p185 = scmp.ne.s32.totalorder %s176, %s177
      %p186 = scmp.eq.s32.totalorder %s26, 0
      %p187 = por %p185, %p186
      %p188 = scmp.ne.s32.totalorder %s176, %s177
      %p189 = scmp.eq.s32.totalorder %s27, 3
      %p190 = por %p188, %p189
      %p192 = scmp.ne.s32.totalorder %s177, %s191
      %p193 = scmp.eq.s32.totalorder %s27, 0
      %p194 = por %p192, %p193
      %s195 = ssub.s32 %s28, %s40
      %p196 = scmp.eq.s32.totalorder %s195, 0
      %s198 = sadd.s32 %s197, 1
      %s199 = scalar_select %p196, %s197, %s198
      %p202 = pneg %p196
      %p203 = scmp.eq.s32.totalorder %s21, 3
      %p204 = por %p202, %p203
      %p205 = scmp.ne.s32.totalorder %s197, %s200
      %p206 = scmp.eq.s32.totalorder %s21, 0
      %p207 = por %p205, %p206
      %p208 = scmp.ne.s32.totalorder %s197, %s200
      %p209 = scmp.eq.s32.totalorder %s26, 3
      %p210 = por %p208, %p209
      %p211 = scmp.ne.s32.totalorder %s200, %s201
      %p212 = scmp.eq.s32.totalorder %s26, 0
      %p213 = por %p211, %p212
      %p214 = scmp.ne.s32.totalorder %s200, %s201
      %p215 = scmp.eq.s32.totalorder %s27, 3
      %p216 = por %p214, %p215
      %p218 = scmp.ne.s32.totalorder %s201, %s217
      %p219 = scmp.eq.s32.totalorder %s27, 0
      %p220 = por %p218, %p219
      %s221 = ssub.s32 %s28, %s40
      %p222 = scmp.eq.s32.totalorder %s221, 0
      %s224 = sadd.s32 %s223, 1
      %s225 = scalar_select %p222, %s223, %s224
      %p228 = pneg %p222
      %p229 = scmp.eq.s32.totalorder %s21, 3
      %p230 = por %p228, %p229
      %p231 = scmp.ne.s32.totalorder %s223, %s226
      %p232 = scmp.eq.s32.totalorder %s21, 0
      %p233 = por %p231, %p232
      %p234 = scmp.ne.s32.totalorder %s223, %s226
      %p235 = scmp.eq.s32.totalorder %s26, 3
      %p236 = por %p234, %p235
      %p237 = scmp.ne.s32.totalorder %s226, %s227
      %p238 = scmp.eq.s32.totalorder %s26, 0
      %p239 = por %p237, %p238
      %p240 = scmp.ne.s32.totalorder %s226, %s227
      %p241 = scmp.eq.s32.totalorder %s27, 3
      %p242 = por %p240, %p241
      %p244 = scmp.ne.s32.totalorder %s227, %s243
      %p245 = scmp.eq.s32.totalorder %s27, 0
      %p246 = por %p244, %p245
      %p247 = scmp.le.s32.totalorder 1, %s21
      %p248 = scmp.lt.s32.totalorder %s21, 5
      %p249 = pnand %p247, %p248
      %p250 = pneg %p249
      // Predicated region
      $region9: #{dld3_forward.1} parent=5 // pred_check
        _
      $region10: #{dld3_forward.1} parent=5 // pred_check_branch
        %252 = sbr.rel (%p249) target = $region12
      $region11: #{dld3_forward.1} parent=5 // pred_region
        %s253 = ssub.s32 %s21, 1
        // Predicated region
        $region13: #{dld3_forward.1} parent=11 // pred_check
          %p254 = pneg %p82
        $region14: #{dld3_forward.1} parent=11 // pred_check_branch
          %256 = sbr.rel (%p254) target = $region16
        $region15: #{dld3_forward.1} parent=11 // pred_region
          _
        $region16: #{dld3_forward.1} parent=11 // pred_fallthru
          _
        // Predicated region
        $region17: #{dld3_forward.1} parent=11 // pred_check
          %p257 = pneg %p103
        $region18: #{dld3_forward.1} parent=11 // pred_check_branch
          %259 = sbr.rel (%p257) target = $region20
        $region19: #{dld3_forward.1} parent=11 // pred_region
          _
        $region20: #{dld3_forward.1} parent=11 // pred_fallthru
          _
        // Predicated region
        $region21: #{dld3_forward.1} parent=11 // pred_check
          %p260 = pneg %p124
        $region22: #{dld3_forward.1} parent=11 // pred_check_branch
          %262 = sbr.rel (%p260) target = $region24
        $region23: #{dld3_forward.1} parent=11 // pred_region
          _
        $region24: #{dld3_forward.1} parent=11 // pred_fallthru
          _
        // Predicated region
        $region25: #{dld3_forward.1} parent=11 // pred_check
          %p263 = pneg %p145
        $region26: #{dld3_forward.1} parent=11 // pred_check_branch
          %265 = sbr.rel (%p263) target = $region28
        $region27: #{dld3_forward.1} parent=11 // pred_region
          _
        $region28: #{dld3_forward.1} parent=11 // pred_fallthru
          _
        // Predicated region
        $region29: #{dld3_forward.1} parent=11 // pred_check
          %p266 = pneg %p166
        $region30: #{dld3_forward.1} parent=11 // pred_check_branch
          %268 = sbr.rel (%p266) target = $region32
        $region31: #{dld3_forward.1} parent=11 // pred_region
          _
        $region32: #{dld3_forward.1} parent=11 // pred_fallthru
          _
        // Predicated region
        $region33: #{dld3_forward.1} parent=11 // pred_check
          %p269 = pneg %p187
        $region34: #{dld3_forward.1} parent=11 // pred_check_branch
          %271 = sbr.rel (%p269) target = $region36
        $region35: #{dld3_forward.1} parent=11 // pred_region
          _
        $region36: #{dld3_forward.1} parent=11 // pred_fallthru
          _
      $region12: #{dld3_forward.1} parent=5 // pred_fallthru
        _
      %p272 = scmp.lt.s32.totalorder %s21, 4
      // Predicated region
      $region37: #{dld3_forward.1} parent=5 // pred_check
        %p273 = pneg %p272
      $region38: #{dld3_forward.1} parent=5 // pred_check_branch
        %275 = sbr.rel (%p273) target = $region40
      $region39: #{dld3_forward.1} parent=5 // pred_region
        // Predicated region
        $region41: #{dld3_forward.1} parent=39 // pred_check
          %p276 = pneg %p55
        $region42: #{dld3_forward.1} parent=39 // pred_check_branch
          %278 = sbr.rel (%p276) target = $region44
        $region43: #{dld3_forward.1} parent=39 // pred_region
          %s279 = smul.u32 16, %s29
          %p280 = scmp.lt.s32.totalorder %s28, 1
          %s281 = scalar_select %p280, %s28, 1
          %p282 = scmp.lt.s32.totalorder %s279, 31
          %s283 = scalar_select %p282, %s279, 31
          %s284 = smul.addr %s281, 32
          %s285 = sadd.s32 %s283, %s284
          %s286 = smul.addr %s285, 4
          %s287 = scalar_lea.vmem %s0, %s286
          %s288 = smul.u32 16, %s29
        $region44: #{dld3_forward.1} parent=39 // pred_fallthru
          _
      $region40: #{dld3_forward.1} parent=5 // pred_fallthru
        _
      %p289 = scmp.le.s32.totalorder 1, %s21
      %p290 = scmp.lt.s32.totalorder %s21, 5
      %p291 = pnand %p289, %p290
      %p292 = pneg %p291
      // Predicated region
      $region45: #{dld3_forward.1} parent=5 // pred_check
        _
      $region46: #{dld3_forward.1} parent=5 // pred_check_branch
        %294 = sbr.rel (%p291) target = $region48
      $region47: #{dld3_forward.1} parent=5 // pred_region
        %s295 = ssub.s32 %s21, 1
        %s296 = smul.u32 16, %s31
        %p297 = scmp.lt.s32.totalorder %s30, 1
        %s298 = scalar_select %p297, %s30, 1
        %p299 = scmp.lt.s32.totalorder %s296, 31
        %s300 = scalar_select %p299, %s296, 31
        %s301 = smul.addr %s298, 32
        %s302 = sadd.s32 %s300, %s301
        %s303 = smul.addr %s302, 4
        %s304 = scalar_lea.vmem %s0, %s303
        %p305 = pneg %p61
        %p306 = pneg %p58
        %p307 = pneg %p82
        %p308 = pneg %p79
        %p309 = pneg %p103
        %p310 = pneg %p100
        %p311 = pneg %p124
        %p312 = pneg %p121
        %p313 = pneg %p145
        %p314 = pneg %p142
        %p315 = pneg %p166
        %p316 = pneg %p163
        %p317 = pneg %p187
        %p318 = pneg %p184
        %p319 = pneg %p213
        %p320 = pneg %p210
        %s321 = sand.u32 %s200, 1
        %s322 = scalar_lea.sflag [#allocation4], %s321
        %s323 = sand.u32 %s200, 1
        %s324 = scalar_lea.vmem [#allocation3], %s323
        %p325 = pneg %p239
        %p326 = pneg %p236
        %s327 = sand.u32 %s226, 1
        %s328 = scalar_lea.sflag [#allocation6], %s327
        %s329 = sand.u32 %s226, 1
        %s330 = scalar_lea.vmem [#allocation5], %s329
        %s331 = smul.u32 16, %s31
        %p332 = scmp.lt.s32.totalorder %s30, 1
        %s333 = scalar_select %p332, %s30, 1
        %p334 = scmp.lt.s32.totalorder %s331, 31
        %s335 = scalar_select %p334, %s331, 31
        %s336 = smul.addr %s333, 32
        %s337 = sadd.s32 %s335, %s336
        %s338 = smul.addr %s337, 4
        %s339 = scalar_lea.vmem %s0, %s338
        %s340 = smul.u32 16, %s31
        %p341 = scmp.eq.s32.totalorder %s31, 0
        // Predicated region
        $region49: #{dld3_forward.1} parent=47 // pred_check
          %p342 = pneg %p341
        $region50: #{dld3_forward.1} parent=47 // pred_check_branch
          %344 = sbr.rel (%p342) target = $region52
        $region51: #{dld3_forward.1} parent=47 // pred_region
          %345 = vst [vmem:[#allocation2] sm:$0x1] 0.0
        $region52: #{dld3_forward.1} parent=47 // pred_fallthru
          _
        %v346 = vld [vmem:[%s339] sm:$0xf]
        %v347 = vld [vmem:[%s339 + $0x4] sm:$0xf]
        %v348 = vld [vmem:[%s339 + $0x8] sm:$0xf]
        %v349 = vld [vmem:[%s339 + $0xc] sm:$0xf]
        %v350 = vld [vmem:[%s339 + $0x10] sm:$0xf]
        %v351 = vld [vmem:[%s339 + $0x14] sm:$0xf]
        %v352 = vld [vmem:[%s339 + $0x18] sm:$0xf]
        %v353 = vld [vmem:[%s339 + $0x1c] sm:$0xf]
        %v354 = vld [vmem:[%s339 + $0x20] sm:$0xf]
        %v355 = vld [vmem:[%s339 + $0x24] sm:$0xf]
        %v356 = vld [vmem:[%s339 + $0x28] sm:$0xf]
        %v357 = vld [vmem:[%s339 + $0x2c] sm:$0xf]
        %v358 = vld [vmem:[%s339 + $0x30] sm:$0xf]
        %v359 = vld [vmem:[%s339 + $0x34] sm:$0xf]
        %v360 = vld [vmem:[%s339 + $0x38] sm:$0xf]
        %v361 = vld [vmem:[%s339 + $0x3c] sm:$0xf]
        %v362 = vld [vmem:[%s1] sm:$0xf]
        %v363 = vld [vmem:[%s1 + $0x4] sm:$0xf]
        %v364 = vld [vmem:[%s1 + $0x8] sm:$0xf]
        %v365 = vld [vmem:[%s1 + $0xc] sm:$0xf]
        %v366 = vld [vmem:[%s1 + $0x10] sm:$0xf]
        %v367 = vld [vmem:[%s1 + $0x14] sm:$0xf]
        %v368 = vld [vmem:[%s1 + $0x18] sm:$0xf]
        %v369 = vld [vmem:[%s1 + $0x1c] sm:$0xf]
        %v370 = vld [vmem:[%s1 + $0x20] sm:$0xf]
        %v371 = vld [vmem:[%s1 + $0x24] sm:$0xf]
        %v372 = vld [vmem:[%s1 + $0x28] sm:$0xf]
        %v373 = vld [vmem:[%s1 + $0x2c] sm:$0xf]
        %v374 = vld [vmem:[%s1 + $0x30] sm:$0xf]
        %v375 = vld [vmem:[%s1 + $0x34] sm:$0xf]
        %v376 = vld [vmem:[%s1 + $0x38] sm:$0xf]
        %v377 = vld [vmem:[%s1 + $0x3c] sm:$0xf]
        %v378 = vld [vmem:[%s2] sm:$0x1]
        %v380 = vperm.slane %v378, 0
        %v398 = vunpack.c.l.b16 %v346
        %v399 = vunpack.c.l.b16 %v347
        %v400 = vunpack.c.l.b16 %v348
        %v401 = vunpack.c.l.b16 %v349
        %v402 = vunpack.c.l.b16 %v350
        %v403 = vunpack.c.l.b16 %v351
        %v404 = vunpack.c.l.b16 %v352
        %v405 = vunpack.c.l.b16 %v353
        %v406 = vunpack.c.l.b16 %v354
        %v407 = vunpack.c.l.b16 %v355
        %v408 = vunpack.c.l.b16 %v356
        %v409 = vunpack.c.l.b16 %v357
        %v410 = vunpack.c.l.b16 %v358
        %v411 = vunpack.c.l.b16 %v359
        %v412 = vunpack.c.l.b16 %v360
        %v413 = vunpack.c.l.b16 %v361
        %v414 = vpack.c.b16 %v399, %v398
        %v415 = vpack.c.b16 %v401, %v400
        %v416 = vpack.c.b16 %v403, %v402
        %v417 = vpack.c.b16 %v405, %v404
        %v418 = vpack.c.b16 %v407, %v406
        %v419 = vpack.c.b16 %v409, %v408
        %v420 = vpack.c.b16 %v411, %v410
        %v421 = vpack.c.b16 %v413, %v412
        %v446 = vunpack.c.l.b16 %v362
        %v447 = vunpack.c.l.b16 %v363
        %v448 = vunpack.c.l.b16 %v364
        %v449 = vunpack.c.l.b16 %v365
        %v450 = vunpack.c.l.b16 %v366
        %v451 = vunpack.c.l.b16 %v367
        %v452 = vunpack.c.l.b16 %v368
        %v453 = vunpack.c.l.b16 %v369
        %v454 = vunpack.c.l.b16 %v370
        %v455 = vunpack.c.l.b16 %v371
        %v456 = vunpack.c.l.b16 %v372
        %v457 = vunpack.c.l.b16 %v373
        %v458 = vunpack.c.l.b16 %v374
        %v459 = vunpack.c.l.b16 %v375
        %v460 = vunpack.c.l.b16 %v376
        %v461 = vunpack.c.l.b16 %v377
        %v462 = vpack.c.b16 %v447, %v446
        %v463 = vpack.c.b16 %v449, %v448
        %v464 = vpack.c.b16 %v451, %v450
        %v465 = vpack.c.b16 %v453, %v452
        %v466 = vpack.c.b16 %v455, %v454
        %v467 = vpack.c.b16 %v457, %v456
        %v468 = vpack.c.b16 %v459, %v458
        %v469 = vpack.c.b16 %v461, %v460
        %478 = vmatpush.bf16.msra.mxu0 %v469
        %479 = vmatpush.bf16.msra.mxu0 %v468
        %480 = vmatpush.bf16.msra.mxu0 %v467
        %481 = vmatpush.bf16.msra.mxu0 %v466
        %482 = vmatpush.bf16.msra.mxu0 %v465
        %483 = vmatpush.bf16.msra.mxu0 %v464
        %484 = vmatpush.bf16.msra.mxu0 %v463
        %485 = vmatpush.bf16.msra.mxu0 %v462
        %486 = vmatmul.bf16.gmra.mxu0 %v414
        %v487 = vpop.f32.mrf.mxu0
        %v488 = vadd.f32 %v380, %v487
        %v489 = vpop.f32.mrf.mxu0
        %v490 = vadd.f32 %v380, %v489
        %491 = vmatmul.bf16.gmra.mxu0 %v415
        %v492 = vpop.f32.mrf.mxu0
        %v493 = vadd.f32 %v380, %v492
        %v494 = vpop.f32.mrf.mxu0
        %v495 = vadd.f32 %v380, %v494
        %496 = vmatmul.bf16.gmra.mxu0 %v416
        %v497 = vpop.f32.mrf.mxu0
        %v498 = vadd.f32 %v380, %v497
        %v499 = vpop.f32.mrf.mxu0
        %v500 = vadd.f32 %v380, %v499
        %501 = vmatmul.bf16.gmra.mxu0 %v417
        %v502 = vpop.f32.mrf.mxu0
        %v503 = vadd.f32 %v380, %v502
        %v504 = vpop.f32.mrf.mxu0
        %v505 = vadd.f32 %v380, %v504
        %506 = vmatmul.bf16.gmra.mxu0 %v418
        %v507 = vpop.f32.mrf.mxu0
        %v508 = vadd.f32 %v380, %v507
        %v509 = vpop.f32.mrf.mxu0
        %v510 = vadd.f32 %v380, %v509
        %511 = vmatmul.bf16.gmra.mxu0 %v419
        %v512 = vpop.f32.mrf.mxu0
        %v513 = vadd.f32 %v380, %v512
        %v514 = vpop.f32.mrf.mxu0
        %v515 = vadd.f32 %v380, %v514
        %516 = vmatmul.bf16.gmra.mxu0 %v420
        %v517 = vpop.f32.mrf.mxu0
        %v518 = vadd.f32 %v380, %v517
        %v519 = vpop.f32.mrf.mxu0
        %v520 = vadd.f32 %v380, %v519
        %521 = vmatmul.bf16.gmra.mxu0 %v421
        %v522 = vpop.f32.mrf.mxu0
        %v523 = vadd.f32 %v380, %v522
        %v524 = vpop.f32.mrf.mxu0
        %v525 = vadd.f32 %v380, %v524
        %526 = vdwg.mxu0
        %v527 = vmax.f32 %v488, 0.0
        %v528 = vmax.f32 %v490, 0.0
        %v529 = vmax.f32 %v493, 0.0
        %v530 = vmax.f32 %v495, 0.0
        %v531 = vmax.f32 %v498, 0.0
        %v532 = vmax.f32 %v500, 0.0
        %v533 = vmax.f32 %v503, 0.0
        %v534 = vmax.f32 %v505, 0.0
        %v535 = vmax.f32 %v508, 0.0
        %v536 = vmax.f32 %v510, 0.0
        %v537 = vmax.f32 %v513, 0.0
        %v538 = vmax.f32 %v515, 0.0
        %v539 = vmax.f32 %v518, 0.0
        %v540 = vmax.f32 %v520, 0.0
        %v541 = vmax.f32 %v523, 0.0
        %v542 = vmax.f32 %v525, 0.0
        %v543 = vld [vmem:[#allocation2] sm:$0x1]
        %544 = vmatpush.msra.mxu0 %v542
        %545 = vmatpush.msra.mxu0 %v541
        %546 = vmatpush.msra.mxu0 %v540
        %547 = vmatpush.msra.mxu0 %v539
        %548 = vmatpush.msra.mxu0 %v538
        %549 = vmatpush.msra.mxu0 %v537
        %550 = vmatpush.msra.mxu0 %v536
        %551 = vmatpush.msra.mxu0 %v535
        %552 = vmatpush.msra.mxu0 %v534
        %553 = vmatpush.msra.mxu0 %v533
        %554 = vmatpush.msra.mxu0 %v532
        %555 = vmatpush.msra.mxu0 %v531
        %556 = vmatpush.msra.mxu0 %v530
        %557 = vmatpush.msra.mxu0 %v529
        %558 = vmatpush.msra.mxu0 %v528
        %559 = vmatpush.msra.mxu0 %v527
        %560 = vmatmul.f32.gmra.mxu0 1.0
        %v561 = vpop.f32.mrf.mxu0
        %v562 = vadd.f32 0.0, %v561
        %563 = vdwg.mxu0
        %v564 = vadd.f32 %v543, %v562
        %565 = vst [vmem:[#allocation2] sm:$0x1] %v564
        %p566 = scmp.eq.s32.totalorder %s31, 1
        // Predicated region
        $region53: #{dld3_forward.1} parent=47 // pred_check
          %p567 = pneg %p566
        $region54: #{dld3_forward.1} parent=47 // pred_check_branch
          %569 = sbr.rel (%p567) target = $region56
        $region55: #{dld3_forward.1} parent=47 // pred_region
          %v570 = vld [vmem:[#allocation2] sm:$0x1]
          %v571 = vmul.f32 %v570, 0.00390625
          %v572 = vld [vmem:[%s3] sm:$0xff]
          %v573 = vld [vmem:[%s3 + $0x8] sm:$0xff]
          %v574 = vld [vmem:[%s3 + $0x10] sm:$0xff]
          %v575 = vld [vmem:[%s3 + $0x18] sm:$0xff]
          %v576 = vld [vmem:[%s3 + $0x20] sm:$0xff]
          %v577 = vld [vmem:[%s3 + $0x28] sm:$0xff]
          %v578 = vld [vmem:[%s3 + $0x30] sm:$0xff]
          %v579 = vld [vmem:[%s3 + $0x38] sm:$0xff]
          %v580 = vld [vmem:[%s3 + $0x40] sm:$0xff]
          %v581 = vld [vmem:[%s3 + $0x48] sm:$0xff]
          %v582 = vld [vmem:[%s3 + $0x50] sm:$0xff]
          %v583 = vld [vmem:[%s3 + $0x58] sm:$0xff]
          %v584 = vld [vmem:[%s3 + $0x60] sm:$0xff]
          %v585 = vld [vmem:[%s3 + $0x68] sm:$0xff]
          %v586 = vld [vmem:[%s3 + $0x70] sm:$0xff]
          %v587 = vld [vmem:[%s3 + $0x78] sm:$0xff]
          %v588 = vld [vmem:[%s4] sm:$0x1]
          %589 = vmatpush.msra.mxu0 %v587
          %590 = vmatpush.msra.mxu0 %v586
          %591 = vmatpush.msra.mxu0 %v585
          %592 = vmatpush.msra.mxu0 %v584
          %593 = vmatpush.msra.mxu0 %v583
          %594 = vmatpush.msra.mxu0 %v582
          %595 = vmatpush.msra.mxu0 %v581
          %596 = vmatpush.msra.mxu0 %v580
          %597 = vmatpush.msra.mxu0 %v579
          %598 = vmatpush.msra.mxu0 %v578
          %599 = vmatpush.msra.mxu0 %v577
          %600 = vmatpush.msra.mxu0 %v576
          %601 = vmatpush.msra.mxu0 %v575
          %602 = vmatpush.msra.mxu0 %v574
          %603 = vmatpush.msra.mxu0 %v573
          %604 = vmatpush.msra.mxu0 %v572
          %605 = vmatmul.f32.gmra.mxu0 %v571
          %v606 = vpop.f32.mrf.mxu0
          %v607 = vadd.f32 %v588, %v606
          %608 = vdwg.mxu0
          %609 = vst [vmem:[%s324] sm:$0x1] %v607
          %v610 = vld [vmem:[%s5] sm:$0xff]
          %v611 = vld [vmem:[%s5 + $0x8] sm:$0xff]
          %v612 = vld [vmem:[%s5 + $0x10] sm:$0xff]
          %v613 = vld [vmem:[%s5 + $0x18] sm:$0xff]
          %v614 = vld [vmem:[%s5 + $0x20] sm:$0xff]
          %v615 = vld [vmem:[%s5 + $0x28] sm:$0xff]
          %v616 = vld [vmem:[%s5 + $0x30] sm:$0xff]
          %v617 = vld [vmem:[%s5 + $0x38] sm:$0xff]
          %v618 = vld [vmem:[%s5 + $0x40] sm:$0xff]
          %v619 = vld [vmem:[%s5 + $0x48] sm:$0xff]
          %v620 = vld [vmem:[%s5 + $0x50] sm:$0xff]
          %v621 = vld [vmem:[%s5 + $0x58] sm:$0xff]
          %v622 = vld [vmem:[%s5 + $0x60] sm:$0xff]
          %v623 = vld [vmem:[%s5 + $0x68] sm:$0xff]
          %v624 = vld [vmem:[%s5 + $0x70] sm:$0xff]
          %v625 = vld [vmem:[%s5 + $0x78] sm:$0xff]
          %v626 = vld [vmem:[%s6] sm:$0x1]
          %627 = vmatpush.msra.mxu0 %v625
          %628 = vmatpush.msra.mxu0 %v624
          %629 = vmatpush.msra.mxu0 %v623
          %630 = vmatpush.msra.mxu0 %v622
          %631 = vmatpush.msra.mxu0 %v621
          %632 = vmatpush.msra.mxu0 %v620
          %633 = vmatpush.msra.mxu0 %v619
          %634 = vmatpush.msra.mxu0 %v618
          %635 = vmatpush.msra.mxu0 %v617
          %636 = vmatpush.msra.mxu0 %v616
          %637 = vmatpush.msra.mxu0 %v615
          %638 = vmatpush.msra.mxu0 %v614
          %639 = vmatpush.msra.mxu0 %v613
          %640 = vmatpush.msra.mxu0 %v612
          %641 = vmatpush.msra.mxu0 %v611
          %642 = vmatpush.msra.mxu0 %v610
          %643 = vmatmul.f32.gmra.mxu0 %v607
          %v644 = vpop.f32.mrf.mxu0
          %v645 = vadd.f32 %v626, %v644
          %646 = vdwg.mxu0
          %647 = vst [vmem:[%s330] sm:$0x1] %v645
        $region56: #{dld3_forward.1} parent=47 // pred_fallthru
          _
        %s648 = sand.u32 %s200, 1
        %s649 = scalar_lea.sflag [#allocation4], %s648
        %s650 = sand.u32 %s200, 1
        %s651 = scalar_lea.vmem [#allocation3], %s650
        %s652 = sand.u32 %s226, 1
        %s653 = scalar_lea.sflag [#allocation6], %s652
        %s654 = sand.u32 %s226, 1
        %s655 = scalar_lea.vmem [#allocation5], %s654
        // Predicated region
        $region57: #{dld3_forward.1} parent=47 // pred_check
          %p656 = pneg %p210
        $region58: #{dld3_forward.1} parent=47 // pred_check_branch
          %658 = sbr.rel (%p656) target = $region60
        $region59: #{dld3_forward.1} parent=47 // pred_region
          %660 = vsyncadd %s649, 0
          %s661 = scalar_lea.hbm %s7, %s30
          %s663 = sshll.u32 %s651, 4
          %s664 = int_to_ptr.vmem [resolvable:$true] %s663
          %s665 = sshll.u32 %s661, 4
          %s666 = int_to_ptr.hbm [resolvable:$true] %s665
          %668 = dma.vmem_to_hbm [thread:$0]  %s664, 16, %s666, %s649
        $region60: #{dld3_forward.1} parent=47 // pred_fallthru
          _
        // Predicated region
        $region61: #{dld3_forward.1} parent=47 // pred_check
          %p669 = pneg %p236
        $region62: #{dld3_forward.1} parent=47 // pred_check_branch
          %671 = sbr.rel (%p669) target = $region64
        $region63: #{dld3_forward.1} parent=47 // pred_region
          %673 = vsyncadd %s653, 0
          %s674 = scalar_lea.hbm %s8, %s30
          %s676 = sshll.u32 %s655, 4
          %s677 = int_to_ptr.vmem [resolvable:$true] %s676
          %s678 = sshll.u32 %s674, 4
          %s679 = int_to_ptr.hbm [resolvable:$true] %s678
          %681 = dma.vmem_to_hbm [thread:$0]  %s677, 16, %s679, %s653
        $region64: #{dld3_forward.1} parent=47 // pred_fallthru
          _
      $region48: #{dld3_forward.1} parent=5 // pred_fallthru
        _
      %p682 = scmp.le.s32.totalorder 2, %s21
      // Predicated region
      $region65: #{dld3_forward.1} parent=5 // pred_check
        %p683 = pneg %p682
      $region66: #{dld3_forward.1} parent=5 // pred_check_branch
        %685 = sbr.rel (%p683) target = $region68
      $region67: #{dld3_forward.1} parent=5 // pred_region
        %s686 = ssub.s32 %s21, 2
        // Predicated region
        $region69: #{dld3_forward.1} parent=67 // pred_check
          %p687 = pneg %p216
        $region70: #{dld3_forward.1} parent=67 // pred_check_branch
          %689 = sbr.rel (%p687) target = $region72
        $region71: #{dld3_forward.1} parent=67 // pred_region
          %s690 = sand.u32 %s201, 1
          %s691 = scalar_lea.sflag [#allocation4], %s690
          %s692 = sand.u32 %s201, 1
          %s693 = scalar_lea.vmem [#allocation3], %s692
          %695 = dma.done %s691, 16
        $region72: #{dld3_forward.1} parent=67 // pred_fallthru
          _
        // Predicated region
        $region73: #{dld3_forward.1} parent=67 // pred_check
          %p696 = pneg %p242
        $region74: #{dld3_forward.1} parent=67 // pred_check_branch
          %698 = sbr.rel (%p696) target = $region76
        $region75: #{dld3_forward.1} parent=67 // pred_region
          %s699 = sand.u32 %s227, 1
          %s700 = scalar_lea.sflag [#allocation6], %s699
          %s701 = sand.u32 %s227, 1
          %s702 = scalar_lea.vmem [#allocation5], %s701
          %704 = dma.done %s700, 16
        $region76: #{dld3_forward.1} parent=67 // pred_fallthru
          _
      $region68: #{dld3_forward.1} parent=5 // pred_fallthru
        _
    $region6: #{dld3_forward.1} parent=1 // loop_footer
      %s25 = sadd.s32 1, %s21
    $region7: #{dld3_forward.1} parent=1 // loop_footer_branch
      %20 = sbr.rel target = $region3
    $region8: #{dld3_forward.1} parent=1 // loop_exit
      _
    %705 = vsyncpa [#allocation4], 1
    %s706 = scalar_lea.sflag [#allocation4], 1
    %707 = vsyncpa %s706, 1
    %708 = vsyncpa [#allocation6], 1
    %s709 = scalar_lea.sflag [#allocation6], 1
    %710 = vsyncpa %s709, 1

</llo_original>
